<compile_context>
chip_gen: v5e
topology: v5e:2x2
jax: 0.10.0
libtpu: 0.0.40
codegen_flags: <defaults>
</compile_context>

<pallas_src>
import jax
import jax.numpy as jnp
from jax.experimental import pallas as pl
from jax.experimental.pallas import tpu as pltpu


def _round_up(x: int, m: int) -> int:
    return ((x + m - 1) // m) * m


def time2vec_kernel(x_ref, w_ref, b_ref, out_ref):
    # x_ref:   (tile_rows, pack*Fin)        packed batch tile
    # w_ref:   (pack*Fin, 2*pack*Fout)      [blockdiag(W1) | blockdiag(W2)], VMEM-resident
    # b_ref:   (1,        2*pack*Fout)      [tile(b1)      | tile(b2)]
    # out_ref: (2, tile_rows, pack*Fout)    plane 0 = sin branch, plane 1 = linear branch
    lanes = out_ref.shape[2]

    # One fused MXU matmul per batch tile, f32 accumulation, bias broadcast once.
    y = jnp.dot(x_ref[...], w_ref[...], preferred_element_type=jnp.float32)
    y = y + b_ref[...]

    # Slice at the (lane-aligned) branch boundary; sin runs lane-dense.
    # NOTE: sin is a VPU range-reduction + polynomial (not an EUP op); the
    # lane-dense layout above is what keeps its VALU cost minimal.
    out_ref[0] = jnp.sin(y[:, :lanes]).astype(out_ref.dtype)
    out_ref[1] = y[:, lanes:].astype(out_ref.dtype)


def fuse_time2vec_params(w1, b1, w2, b2, *, lanes=128):
    """One-time parameter prep. Call at module init, NOT per forward pass.

    w1/w2: (Fin, Fout)  (transpose of nn.Linear's (out, in) weight)
    b1/b2: (1,  Fout)
    Returns (w_cat, b_cat, pack, fout).
    """
    fin, fout = w1.shape
    # Pack `pack` batch rows per 128-lane row when Fout divides 128; otherwise
    # fall back to pack=1 (Fout >= 128 is already lane-dense or full-extent).
    pack = lanes // fout if (fout < lanes and lanes % fout == 0) else 1
    eye = jnp.eye(pack, dtype=w1.dtype)
    w_cat = jnp.concatenate([jnp.kron(eye, w1), jnp.kron(eye, w2)], axis=1)
    b_cat = jnp.concatenate([jnp.tile(b1, (1, pack)), jnp.tile(b2, (1, pack))], axis=1)
    return w_cat, b_cat, pack, fout


def time2vec_apply(x, w_cat, b_cat, pack, fout, *, tile_b=8192):
    """x: (B, Fin); fused params from fuse_time2vec_params -> out: (2B, Fout)."""
    B, fin = x.shape
    lanes_out = pack * fout                 # 128 in the lane-dense case
    itemsize = jnp.dtype(x.dtype).itemsize
    sublane = {4: 8, 2: 16, 1: 32}.get(itemsize, 8)
    align = sublane * pack                  # tile_b alignment (x and out sublanes)

    # ---- batch tile selection -------------------------------------------
    # Largest aligned tile not exceeding the request or the (aligned) batch.
    tile_b = max(align, min((tile_b // align) * align, _round_up(B, align)))
    # v7x megacore: keep >= 2 grid steps when the batch allows, so the
    # "parallel" axis can shard across both TensorCores.
    if pl.cdiv(B, tile_b) < 2 and _round_up(B, align) >= 2 * align:
        tile_b = max(align, _round_up(pl.cdiv(B, 2), align))

    B_pad = _round_up(B, tile_b)            # cdiv + zero-pad for ragged batches
    grid = (B_pad // tile_b,)
    tile_rows = tile_b // pack

    # ---- input packing (free row-major reshape + zero pad, outside kernel) --
    x_pad = x if B_pad == B else jnp.pad(x, ((0, B_pad - B), (0, 0)))
    x_packed = x_pad.reshape(B_pad // pack, pack * fin)

    out3 = pl.pallas_call(
        time2vec_kernel,
        out_shape=jax.ShapeDtypeStruct((2, B_pad // pack, lanes_out), x.dtype),
        grid=grid,
        in_specs=[
            # packed x: tiled over batch.
            pl.BlockSpec((tile_rows, pack * fin), lambda i: (i, 0)),
            # fused weight / bias: constant index_map -> VMEM-resident across grid.
            pl.BlockSpec((pack * fin, 2 * lanes_out), lambda i: (0, 0)),
            pl.BlockSpec((1, 2 * lanes_out), lambda i: (0, 0)),
        ],
        # One block per batch tile covers both concat halves, lane-dense.
        out_specs=pl.BlockSpec((2, tile_rows, lanes_out), lambda i: (0, i, 0)),
        compiler_params=pltpu.CompilerParams(
            dimension_semantics=("parallel",),
        ),
        cost_estimate=pl.CostEstimate(
            flops=2 * (B_pad // pack) * (pack * fin) * (2 * lanes_out),
            transcendentals=B_pad * fout,
            bytes_accessed=itemsize * (
                B_pad * fin                      # x
                + pack * fin * 2 * lanes_out     # fused weight
                + 2 * lanes_out                  # fused bias
                + 2 * B_pad * fout               # output
            ),
        ),
    )(x_packed, w_cat, b_cat)

    # (2, B_pad/pack, pack*Fout) -> (2, B_pad, Fout): free row-major reshape;
    # slice off the pad rows; flatten to (2B, Fout) == torch.cat([v1, v2], 0).
    return out3.reshape(2, B_pad, fout)[:, :B, :].reshape(2 * B, fout)


def time2vec(x, w1, b1, w2, b2, *, tile_b=8192):
    """Convenience wrapper. In production, hoist fuse_time2vec_params to init."""
    w_cat, b_cat, pack, fout = fuse_time2vec_params(w1, b1, w2, b2)
    return time2vec_apply(x, w_cat, b_cat, pack, fout, tile_b=tile_b)


if __name__ == "__main__":
    # Small shapes; B=200 is NOT a multiple of the tile so the cdiv+pad path
    # and a multi-step batch grid are both exercised (tile_b=64 -> grid=(4,)).
    B, Fin, Fout = 200, 16, 32
    key = jax.random.PRNGKey(0)
    kx, kw1, kb1, kw2, kb2 = jax.random.split(key, 5)

    x = jax.random.normal(kx, (B, Fin), dtype=jnp.float32)

    # Deterministic synthetic parameters (nn.Linear weight is (out, in); we
    # store the transpose (in, out)).
    bound = 1.0 / (Fin ** 0.5)
    w1 = jax.random.uniform(kw1, (Fin, Fout), jnp.float32, -bound, bound)
    b1 = jax.random.uniform(kb1, (1, Fout), jnp.float32, -bound, bound)
    w2 = jax.random.uniform(kw2, (Fin, Fout), jnp.float32, -bound, bound)
    b2 = jax.random.uniform(kb2, (1, Fout), jnp.float32, -bound, bound)

    # Fuse parameters once (init-time), then apply.
    fused = fuse_time2vec_params(w1, b1, w2, b2)
    out = jax.block_until_ready(time2vec_apply(x, *fused, tile_b=64))

    # Pure-JAX reference for correctness.
    v1_ref = jnp.sin(x @ w1 + b1)
    v2_ref = x @ w2 + b2
    ref = jnp.concatenate([v1_ref, v2_ref], axis=0)
    assert out.shape == (2 * B, Fout)
    assert jnp.allclose(out, ref, atol=1e-5, rtol=1e-5)

    print("KERNEL_OK")
</pallas_src>

<mosaic_0001>
module attributes {stable_mosaic.version = 11 : i64} {
  func.func @time2vec_kernel(%arg0: i32, %arg1: memref<16x64xf32, #tpu.memory_space<vmem>>, %arg2: memref<64x256xf32, #tpu.memory_space<vmem>>, %arg3: memref<1x256xf32, #tpu.memory_space<vmem>>, %arg4: memref<2x16x128xf32, #tpu.memory_space<vmem>>) attributes {dimension_semantics = [#tpu.dimension_semantics<parallel>], iteration_bounds = array<i64: 4>, scalar_prefetch = 0 : i64, scratch_operands = 0 : i64, tpu.core_type = #tpu.core_type<tc>, window_params = [{transform_indices = @transform_0, window_bounds = array<i64: 16, 64>}, {pipeline_mode = #tpu.pipeline_mode<synchronous>, transform_indices = @transform_1, window_bounds = array<i64: 64, 256>}, {pipeline_mode = #tpu.pipeline_mode<synchronous>, transform_indices = @transform_2, window_bounds = array<i64: 1, 256>}, {transform_indices = @transform_3, window_bounds = array<i64: 2, 16, 128>}]} {
    %c0 = arith.constant 0 : index
    %c0_0 = arith.constant 0 : index
    %0 = vector.load %arg1[%c0, %c0_0] : memref<16x64xf32, #tpu.memory_space<vmem>>, vector<16x64xf32>
    %c0_1 = arith.constant 0 : index
    %c0_2 = arith.constant 0 : index
    %1 = vector.load %arg2[%c0_1, %c0_2] : memref<64x256xf32, #tpu.memory_space<vmem>>, vector<64x256xf32>
    %cst = arith.constant dense<0.000000e+00> : vector<16x256xf32>
    %2 = tpu.matmul %0, %1, %cst {dimension_numbers = #tpu.dot_dimension_numbers<[1], [0], [0], [1], [0, 0, 1, 1], [], []>} : vector<16x64xf32>, vector<64x256xf32>, vector<16x256xf32> -> vector<16x256xf32>
    %c0_3 = arith.constant 0 : index
    %c0_4 = arith.constant 0 : index
    %3 = vector.load %arg3[%c0_3, %c0_4] : memref<1x256xf32, #tpu.memory_space<vmem>>, vector<1x256xf32>
    %4 = vector.broadcast %3 : vector<1x256xf32> to vector<16x256xf32>
    %5 = arith.addf %2, %4 : vector<16x256xf32>
    %6 = vector.extract_strided_slice %5 {offsets = [0, 0], sizes = [16, 128], strides = [1, 1]} : vector<16x256xf32> to vector<16x128xf32>
    %7 = math.sin %6 : vector<16x128xf32>
    %c0_5 = arith.constant 0 : index
    %c0_6 = arith.constant 0 : index
    %c0_7 = arith.constant 0 : index
    %8 = vector.load %arg4[%c0_5, %c0_6, %c0_7] : memref<2x16x128xf32, #tpu.memory_space<vmem>>, vector<1x16x128xf32>
    %9 = vector.shape_cast %8 : vector<1x16x128xf32> to vector<16x128xf32>
    %10 = vector.shape_cast %7 : vector<16x128xf32> to vector<1x16x128xf32>
    tpu.vector_store %arg4[%c0_5, %c0_6, %c0_7], %10 {strides = array<i32>} : memref<2x16x128xf32, #tpu.memory_space<vmem>>, vector<1x16x128xf32>,
    %11 = vector.extract_strided_slice %5 {offsets = [0, 128], sizes = [16, 128], strides = [1, 1]} : vector<16x256xf32> to vector<16x128xf32>
    %c1 = arith.constant 1 : index
    %c0_8 = arith.constant 0 : index
    %c0_9 = arith.constant 0 : index
    %12 = vector.load %arg4[%c1, %c0_8, %c0_9] : memref<2x16x128xf32, #tpu.memory_space<vmem>>, vector<1x16x128xf32>
    %13 = vector.shape_cast %12 : vector<1x16x128xf32> to vector<16x128xf32>
    %14 = vector.shape_cast %11 : vector<16x128xf32> to vector<1x16x128xf32>
    tpu.vector_store %arg4[%c1, %c0_8, %c0_9], %14 {strides = array<i32>} : memref<2x16x128xf32, #tpu.memory_space<vmem>>, vector<1x16x128xf32>,
    return
  }
  func.func @transform_0(%arg0: i32) -> (i32, i32) {
    %c0_i32 = arith.constant 0 : i32
    %c0_i32_0 = arith.constant 0 : i32
    return %arg0, %c0_i32 : i32, i32
  }
  func.func @transform_1(%arg0: i32) -> (i32, i32) {
    %c0_i32 = arith.constant 0 : i32
    %c0_i32_0 = arith.constant 0 : i32
    %c0_i32_1 = arith.constant 0 : i32
    return %c0_i32, %c0_i32_0 : i32, i32
  }
  func.func @transform_2(%arg0: i32) -> (i32, i32) {
    %c0_i32 = arith.constant 0 : i32
    %c0_i32_0 = arith.constant 0 : i32
    %c0_i32_1 = arith.constant 0 : i32
    return %c0_i32, %c0_i32_0 : i32, i32
  }
  func.func @transform_3(%arg0: i32) -> (i32, i32, i32) {
    %c0_i32 = arith.constant 0 : i32
    %c0_i32_0 = arith.constant 0 : i32
    %c0_i32_1 = arith.constant 0 : i32
    return %c0_i32, %arg0, %c0_i32_0 : i32, i32, i32
  }
}

</mosaic_0001>

<llo_original>
// kernel: tpu_custom_call.1
$region0: #{tpu_custom_call.1}
  #allocation0 [shape = 'u32[]', space=smem, size = 0x4, offset = 0x4, fixed_abs, tag = 'smem constant byte address 0x4 - core index']
  #allocation1 [shape = 'u32[72,128]{1,0:T(1,128)}', space=vmem, size = 0x9000, scoped, tag = 'internal scratch']
  #allocation9 [shape = 's32[]', space=sflag, size = 0x4, offset = 0, fixed_abs, tag = 'sflag constant byte address 0x0 - dummy sync flag']
  %s0 = inlined_call_operand.hbm [shape: f32[64,64], index: 0, kind: input, shape index: {}]
  %s1 = inlined_call_operand.hbm [shape: f32[64,256], index: 1, kind: input, shape index: {}]
  %s2 = inlined_call_operand.hbm [shape: f32[1,256], index: 2, kind: input, shape index: {}]
  %s3 = inlined_call_operand.hbm [shape: f32[2,64,128], index: 3, kind: output, shape index: {}]
  %s4 = sld [smem:[#allocation0]]
  $region57: #{tpu_custom_call.1} parent=0
    _
  %s6 = ssub.s32 1, %s4
  %s7 = scalar_select 0, %s6, %s4
  $region1: #{tpu_custom_call.1} parent=0
    #allocation2 [shape = 'u8[16384]{0}', space=vmem, size = 0x4000, scoped, tag = 'input window, operand 0']
    #allocation3 [shape = 's32[2]{0}', space=sflag, size = 0x8, scoped, tag = 'scoped memory for tpu_custom_call.1']
    #allocation4 [shape = 's32[2]{0}', space=sflag, size = 0x8, scoped, tag = 'scoped memory for tpu_custom_call.1']
    #allocation5 [shape = 'u8[65536]{0}', space=vmem, size = 0x10000, scoped, tag = 'input window, operand 1, single buffered']
    #allocation6 [shape = 's32[1]{0}', space=sflag, size = 0x4, scoped, tag = 'scoped memory for tpu_custom_call.1']
    #allocation7 [shape = 'u8[1024]{0}', space=vmem, size = 0x400, scoped, tag = 'input window, operand 2, single buffered']
    #allocation8 [shape = 'u8[32768]{0}', space=vmem, size = 0x8000, scoped, tag = 'output window, operand 0']
    %8 = vsyncpa [#allocation3], 0
    %s9 = scalar_lea.sflag [#allocation3], 1
    %10 = vsyncpa %s9, 0
    %11 = vsyncpa [#allocation6], 0
    %12 = vsyncpa [#allocation4], 0
    %s13 = scalar_lea.sflag [#allocation4], 1
    %14 = vsyncpa %s13, 0
    loop: start=0, step=1, limit=6
    $region2: #{tpu_custom_call.1} parent=1 // loop_pre_header
      _
    $region3: #{tpu_custom_call.1} parent=1 // loop_header
      %s16 = sphi 0, %s20
      %p17 = scmp.ge.s32.totalorder %s16, 6
      %s26 = sphi 0, %s28
      %s29 = sphi 0, %s26
      %s30 = sphi 0, %s29
      %s46 = sphi 0, %s30
      %s50 = sphi 0, %s50
      %s52 = sphi 0, %s50
      %s53 = sphi 0, %s52
      %s67 = sphi 0, %s53
      %s71 = sphi 0, %s71
      %s73 = sphi 0, %s71
      %s74 = sphi 0, %s73
      %s88 = sphi 0, %s74
      %s94 = sphi 0, %s96
      %s97 = sphi 0, %s94
      %s98 = sphi 0, %s97
      %s114 = sphi 0, %s98
    $region4: #{tpu_custom_call.1} parent=1 // loop_header_branch
      %19 = sbr.rel (%p17) target = $region8
    $region5: #{tpu_custom_call.1} parent=1 // loop_body
      %s21 = ssub.s32 %s16, 1
      %s22 = ssub.s32 %s16, 2
      %s23 = sadd.s32 %s16, 1
      %s24 = ssub.s32 %s16, %s23
      %p25 = scmp.eq.s32.totalorder %s24, 0
      %s27 = sadd.s32 %s26, 1
      %s28 = scalar_select %p25, %s26, %s27
      %p31 = pneg %p25
      %p32 = scmp.eq.s32.totalorder %s16, 3
      %p33 = por %p31, %p32
      %p34 = scmp.ne.s32.totalorder %s26, %s29
      %p35 = scmp.eq.s32.totalorder %s16, 0
      %p36 = por %p34, %p35
      %p37 = scmp.ne.s32.totalorder %s26, %s29
      %p38 = scmp.eq.s32.totalorder %s21, 3
      %p39 = por %p37, %p38
      %p40 = scmp.ne.s32.totalorder %s29, %s30
      %p41 = scmp.eq.s32.totalorder %s21, 0
      %p42 = por %p40, %p41
      %p43 = scmp.ne.s32.totalorder %s29, %s30
      %p44 = scmp.eq.s32.totalorder %s22, 3
      %p45 = por %p43, %p44
      %p47 = scmp.ne.s32.totalorder %s30, %s46
      %p48 = scmp.eq.s32.totalorder %s22, 0
      %p49 = por %p47, %p48
      %s51 = sadd.s32 %s50, 1
      %p54 = scmp.eq.s32.totalorder %s16, 3
      %p55 = scmp.ne.s32.totalorder %s50, %s52
      %p56 = scmp.eq.s32.totalorder %s16, 0
      %p57 = por %p55, %p56
      %p58 = scmp.ne.s32.totalorder %s50, %s52
      %p59 = scmp.eq.s32.totalorder %s21, 3
      %p60 = por %p58, %p59
      %p61 = scmp.ne.s32.totalorder %s52, %s53
      %p62 = scmp.eq.s32.totalorder %s21, 0
      %p63 = por %p61, %p62
      %p64 = scmp.ne.s32.totalorder %s52, %s53
      %p65 = scmp.eq.s32.totalorder %s22, 3
      %p66 = por %p64, %p65
      %p68 = scmp.ne.s32.totalorder %s53, %s67
      %p69 = scmp.eq.s32.totalorder %s22, 0
      %p70 = por %p68, %p69
      %s72 = sadd.s32 %s71, 1
      %p75 = scmp.eq.s32.totalorder %s16, 3
      %p76 = scmp.ne.s32.totalorder %s71, %s73
      %p77 = scmp.eq.s32.totalorder %s16, 0
      %p78 = por %p76, %p77
      %p79 = scmp.ne.s32.totalorder %s71, %s73
      %p80 = scmp.eq.s32.totalorder %s21, 3
      %p81 = por %p79, %p80
      %p82 = scmp.ne.s32.totalorder %s73, %s74
      %p83 = scmp.eq.s32.totalorder %s21, 0
      %p84 = por %p82, %p83
      %p85 = scmp.ne.s32.totalorder %s73, %s74
      %p86 = scmp.eq.s32.totalorder %s22, 3
      %p87 = por %p85, %p86
      %p89 = scmp.ne.s32.totalorder %s74, %s88
      %p90 = scmp.eq.s32.totalorder %s22, 0
      %p91 = por %p89, %p90
      %s92 = ssub.s32 %s16, %s23
      %p93 = scmp.eq.s32.totalorder %s92, 0
      %s95 = sadd.s32 %s94, 1
      %s96 = scalar_select %p93, %s94, %s95
      %p99 = pneg %p93
      %p100 = scmp.eq.s32.totalorder %s16, 3
      %p101 = por %p99, %p100
      %p102 = scmp.ne.s32.totalorder %s94, %s97
      %p103 = scmp.eq.s32.totalorder %s16, 0
      %p104 = por %p102, %p103
      %p105 = scmp.ne.s32.totalorder %s94, %s97
      %p106 = scmp.eq.s32.totalorder %s21, 3
      %p107 = por %p105, %p106
      %p108 = scmp.ne.s32.totalorder %s97, %s98
      %p109 = scmp.eq.s32.totalorder %s21, 0
      %p110 = por %p108, %p109
      %p111 = scmp.ne.s32.totalorder %s97, %s98
      %p112 = scmp.eq.s32.totalorder %s22, 3
      %p113 = por %p111, %p112
      %p115 = scmp.ne.s32.totalorder %s98, %s114
      %p116 = scmp.eq.s32.totalorder %s22, 0
      %p117 = por %p115, %p116
      %p118 = scmp.le.s32.totalorder 1, %s16
      %p119 = scmp.lt.s32.totalorder %s16, 5
      %p120 = pnand %p118, %p119
      %p121 = pneg %p120
      // Predicated region
      $region9: #{tpu_custom_call.1} parent=5 // pred_check
        _
      $region10: #{tpu_custom_call.1} parent=5 // pred_check_branch
        %123 = sbr.rel (%p120) target = $region12
      $region11: #{tpu_custom_call.1} parent=5 // pred_region
        %s124 = ssub.s32 %s16, 1
        // Predicated region
        $region13: #{tpu_custom_call.1} parent=11 // pred_check
          %p125 = pneg %p63
        $region14: #{tpu_custom_call.1} parent=11 // pred_check_branch
          %127 = sbr.rel (%p125) target = $region16
        $region15: #{tpu_custom_call.1} parent=11 // pred_region
          %129 = vsyncadd [#allocation6], 0
          %s130 = sshll.u32 %s1, 4
          %s131 = int_to_ptr.hbm [resolvable:$true] %s130
          %s132 = sshll.u32 [#allocation5], 4
          %s133 = int_to_ptr.vmem [resolvable:$true] %s132
          %138 = dma.hbm_to_vmem [thread:$0]  %s131, 2048, %s133, [#allocation6], 256, 256, 16
        $region16: #{tpu_custom_call.1} parent=11 // pred_fallthru
          _
        // Predicated region
        $region17: #{tpu_custom_call.1} parent=11 // pred_check
          %p139 = pneg %p84
        $region18: #{tpu_custom_call.1} parent=11 // pred_check_branch
          %141 = sbr.rel (%p139) target = $region20
        $region19: #{tpu_custom_call.1} parent=11 // pred_region
          %143 = vsyncadd [#allocation6], 0
          %s145 = sshll.u32 %s2, 4
          %s146 = int_to_ptr.hbm [resolvable:$true] %s145
          %s147 = sshll.u32 [#allocation7], 4
          %s148 = int_to_ptr.vmem [resolvable:$true] %s147
          %150 = dma.hbm_to_vmem [thread:$0]  %s146, 32, %s148, [#allocation6]
        $region20: #{tpu_custom_call.1} parent=11 // pred_fallthru
          _
      $region12: #{tpu_custom_call.1} parent=5 // pred_fallthru
        _
      %p151 = scmp.lt.s32.totalorder %s16, 4
      // Predicated region
      $region21: #{tpu_custom_call.1} parent=5 // pred_check
        %p152 = pneg %p151
      $region22: #{tpu_custom_call.1} parent=5 // pred_check_branch
        %154 = sbr.rel (%p152) target = $region24
      $region23: #{tpu_custom_call.1} parent=5 // pred_region
        // Predicated region
        $region25: #{tpu_custom_call.1} parent=23 // pred_check
          %p155 = pneg %p36
        $region26: #{tpu_custom_call.1} parent=23 // pred_check_branch
          %157 = sbr.rel (%p155) target = $region28
        $region27: #{tpu_custom_call.1} parent=23 // pred_region
          %s158 = sand.u32 %s26, 1
          %s159 = scalar_lea.sflag [#allocation3], %s158
          %s160 = sand.u32 %s26, 1
          %s161 = smul.addr %s160, 16
          %s162 = scalar_lea.vmem [#allocation2], %s161
          %s163 = smul.u32 2, %s16
          %165 = vsyncadd %s159, 0
          %s166 = smul.addr %s163, 8
          %s167 = scalar_lea.hbm %s0, %s166
          %s168 = sshll.u32 %s167, 4
          %s169 = int_to_ptr.hbm [resolvable:$true] %s168
          %s170 = sshll.u32 %s162, 4
          %s171 = int_to_ptr.vmem [resolvable:$true] %s170
          %176 = dma.hbm_to_vmem [thread:$0]  %s169, 256, %s171, %s159, 128, 128, 8
        $region28: #{tpu_custom_call.1} parent=23 // pred_fallthru
          _
      $region24: #{tpu_custom_call.1} parent=5 // pred_fallthru
        _
      %p177 = scmp.le.s32.totalorder 1, %s16
      %p178 = scmp.lt.s32.totalorder %s16, 5
      %p179 = pnand %p177, %p178
      %p180 = pneg %p179
      // Predicated region
      $region29: #{tpu_custom_call.1} parent=5 // pred_check
        _
      $region30: #{tpu_custom_call.1} parent=5 // pred_check_branch
        %182 = sbr.rel (%p179) target = $region32
      $region31: #{tpu_custom_call.1} parent=5 // pred_region
        %s183 = ssub.s32 %s16, 1
        %s184 = sand.u32 %s29, 1
        %s185 = scalar_lea.sflag [#allocation3], %s184
        %s186 = sand.u32 %s29, 1
        %s187 = smul.addr %s186, 16
        %s188 = scalar_lea.vmem [#allocation2], %s187
        // Predicated region
        $region33: #{tpu_custom_call.1} parent=31 // pred_check
          %p189 = pneg %p42
        $region34: #{tpu_custom_call.1} parent=31 // pred_check_branch
          %191 = sbr.rel (%p189) target = $region36
        $region35: #{tpu_custom_call.1} parent=31 // pred_region
          %193 = dma.done %s185, 256
        $region36: #{tpu_custom_call.1} parent=31 // pred_fallthru
          _
        // Predicated region
        $region37: #{tpu_custom_call.1} parent=31 // pred_check
          %p194 = pneg %p63
        $region38: #{tpu_custom_call.1} parent=31 // pred_check_branch
          %196 = sbr.rel (%p194) target = $region40
        $region39: #{tpu_custom_call.1} parent=31 // pred_region
          %198 = dma.done [#allocation6], 2048
        $region40: #{tpu_custom_call.1} parent=31 // pred_fallthru
          _
        // Predicated region
        $region41: #{tpu_custom_call.1} parent=31 // pred_check
          %p199 = pneg %p84
        $region42: #{tpu_custom_call.1} parent=31 // pred_check_branch
          %201 = sbr.rel (%p199) target = $region44
        $region43: #{tpu_custom_call.1} parent=31 // pred_region
          %203 = dma.done [#allocation6], 32
        $region44: #{tpu_custom_call.1} parent=31 // pred_fallthru
          _
        %s204 = sand.u32 %s29, 1
        %s205 = scalar_lea.sflag [#allocation3], %s204
        %s206 = sand.u32 %s29, 1
        %s207 = smul.addr %s206, 16
        %s208 = scalar_lea.vmem [#allocation2], %s207
        %p209 = pneg %p42
        %p210 = pneg %p39
        %p211 = pneg %p63
        %p212 = pneg %p60
        %p213 = pneg %p84
        %p214 = pneg %p81
        %p215 = pneg %p110
        %p216 = pneg %p107
        %s217 = sand.u32 %s97, 1
        %s218 = scalar_lea.sflag [#allocation4], %s217
        %s219 = sand.u32 %s97, 1
        %s220 = smul.addr %s219, 32
        %s221 = scalar_lea.vmem [#allocation8], %s220
        %s222 = smul.u32 2, %s21
        %s223 = smul.u32 2, %s21
        %v224 = vld [vmem:[%s188] sm:$0xff]
        %v225 = vld [vmem:[%s188 + $0x8] sm:$0xff]
        %v226 = vld [vmem:[#allocation5] sm:$0xff]
        %v227 = vld [vmem:[#allocation5 + $0x8] sm:$0xff]
        %v228 = vld [vmem:[#allocation5 + $0x10] sm:$0xff]
        %v229 = vld [vmem:[#allocation5 + $0x18] sm:$0xff]
        %v230 = vld [vmem:[#allocation5 + $0x20] sm:$0xff]
        %v231 = vld [vmem:[#allocation5 + $0x28] sm:$0xff]
        %v232 = vld [vmem:[#allocation5 + $0x30] sm:$0xff]
        %v233 = vld [vmem:[#allocation5 + $0x38] sm:$0xff]
        %v234 = vld [vmem:[#allocation5 + $0x40] sm:$0xff]
        %v235 = vld [vmem:[#allocation5 + $0x48] sm:$0xff]
        %v236 = vld [vmem:[#allocation5 + $0x50] sm:$0xff]
        %v237 = vld [vmem:[#allocation5 + $0x58] sm:$0xff]
        %v238 = vld [vmem:[#allocation5 + $0x60] sm:$0xff]
        %v239 = vld [vmem:[#allocation5 + $0x68] sm:$0xff]
        %v240 = vld [vmem:[#allocation5 + $0x70] sm:$0xff]
        %v241 = vld [vmem:[#allocation5 + $0x78] sm:$0xff]
        %v242 = vld [vmem:[#allocation7] sm:$0x3]
        %v244 = vperm.slane %v242, 0
        %v245 = vperm.slane %v242, 1
        %vm248 = vcmask 523264
        %v250 = vsel %vm248, %v224, 0
        %v253 = vsel %vm248, %v225, 0
        %255 = vmatpush.msra.mxu0 0.0
        %256 = vmatpush.msra.mxu0 0.0
        %257 = vmatpush.msra.mxu0 0.0
        %258 = vmatpush.msra.mxu0 0.0
        %259 = vmatpush.msra.mxu0 0.0
        %260 = vmatpush.msra.mxu0 0.0
        %261 = vmatpush.msra.mxu0 0.0
        %262 = vmatpush.msra.mxu0 0.0
        %263 = vmatpush.msra.mxu0 %v240
        %264 = vmatpush.msra.mxu0 %v238
        %265 = vmatpush.msra.mxu0 %v236
        %266 = vmatpush.msra.mxu0 %v234
        %267 = vmatpush.msra.mxu0 %v232
        %268 = vmatpush.msra.mxu0 %v230
        %269 = vmatpush.msra.mxu0 %v228
        %270 = vmatpush.msra.mxu0 %v226
        %271 = vmatmul.f32.gmra.mxu0 %v250
        %v272 = vpop.f32.mrf.mxu0
        %v273 = vadd.f32 %v244, %v272
        %274 = vmatmul.f32.gmra.mxu0 %v253
        %v275 = vpop.f32.mrf.mxu0
        %v276 = vadd.f32 %v244, %v275
        %277 = vdwg.mxu0
        %278 = vmatpush.msra.mxu0 0.0
        %279 = vmatpush.msra.mxu0 0.0
        %280 = vmatpush.msra.mxu0 0.0
        %281 = vmatpush.msra.mxu0 0.0
        %282 = vmatpush.msra.mxu0 0.0
        %283 = vmatpush.msra.mxu0 0.0
        %284 = vmatpush.msra.mxu0 0.0
        %285 = vmatpush.msra.mxu0 0.0
        %286 = vmatpush.msra.mxu0 %v241
        %287 = vmatpush.msra.mxu0 %v239
        %288 = vmatpush.msra.mxu0 %v237
        %289 = vmatpush.msra.mxu0 %v235
        %290 = vmatpush.msra.mxu0 %v233
        %291 = vmatpush.msra.mxu0 %v231
        %292 = vmatpush.msra.mxu0 %v229
        %293 = vmatpush.msra.mxu0 %v227
        %294 = vmatmul.f32.gmra.mxu0 %v250
        %v295 = vpop.f32.mrf.mxu0
        %v296 = vadd.f32 %v245, %v295
        %297 = vmatmul.f32.gmra.mxu0 %v253
        %v298 = vpop.f32.mrf.mxu0
        %v299 = vadd.f32 %v245, %v298
        %300 = vdwg.mxu0
        %v301 = vand.u32 2147483647, %v273
        %vm302 = vcmp.le.f32.partialorder %v301, 0.7853982
        %vm303 = vcmp.lt.s32.totalorder %v273, 0
        %v304 = vand.u32 %v273, 2139095040
        %v305 = vshrl.u32 %v304, 23
        %v306 = vsub.s32 %v305, 127
        %v307 = vand.u32 2147483647, %v273
        %v308 = vand.u32 %v307, 8388607
        %v309 = vor.u32 %v308, 8388608
        %v310 = vsub.s32 0, %v309
        %v311 = vadd.s32 %v306, 1
        %vm312 = vcmp.gt.s32.totalorder %v311, 0
        %v313 = vsel %vm312, %v311, 0
        %v314 = vshrl.u32 %v313, 5
        %v315 = vand.u32 %v313, 31
        %v316 = vsub.s32 32, %v315
        %v317 = vshrl.u32 683565275, %v316
        %v318 = vshll.u32 683565275, %v315
        %v319 = vshrl.u32 2475754826, %v316
        %v320 = vor.u32 %v318, %v319
        %v321 = vshll.u32 2475754826, %v315
        %v322 = vshrl.u32 2131351028, %v316
        %v323 = vor.u32 %v321, %v322
        %v324 = vshll.u32 2131351028, %v315
        %v325 = vshrl.u32 2102212464, %v316
        %v326 = vor.u32 %v324, %v325
        %v327 = vshll.u32 2102212464, %v315
        %v328 = vshrl.u32 920167782, %v316
        %v329 = vor.u32 %v327, %v328
        %v330 = vshll.u32 920167782, %v315
        %v331 = vshrl.u32 1326507024, %v316
        %v332 = vor.u32 %v330, %v331
        %vm333 = vcmp.lt.s32.totalorder %v314, 1
        %vm334 = vcmp.lt.s32.totalorder %v314, 2
        %vm335 = vcmp.lt.s32.totalorder %v314, 3
        %vm336 = vcmp.lt.s32.totalorder %v314, 4
        %v337 = vsel %vm333, %v317, %v320
        %v338 = vsel %vm336, %v326, 2102212464
        %v339 = vsel %vm335, %v323, %v338
        %v340 = vsel %vm334, %v337, %v339
        %v341 = vsel %vm333, %v320, %v323
        %v342 = vsel %vm336, %v329, 920167782
        %v343 = vsel %vm335, %v326, %v342
        %v344 = vsel %vm334, %v341, %v343
        %v345 = vsel %vm333, %v323, %v326
        %v346 = vsel %vm336, %v332, 1326507024
        %v347 = vsel %vm335, %v329, %v346
        %v348 = vsel %vm334, %v345, %v347
        %v349 = vshll.u32 %v309, 8
        %v350 = vand.u32 %v349, 65535
        %v351 = vshrl.u32 %v349, 16
        %v352 = vand.u32 %v348, 65535
        %v353 = vshrl.u32 %v348, 16
        %v354 = vmul.u32 %v350, %v352
        %v355 = vmul.u32 %v350, %v353
        %v356 = vmul.u32 %v351, %v352
        %v357 = vmul.u32 %v351, %v353
        %v358 = vshll.u32 %v355, 16
        %v359 = vshrl.u32 %v355, 16
        %v360 = vshll.u32 %v356, 16
        %v361 = vshrl.u32 %v356, 16
        %vm362 = vc.u32 %v354, %v358
        %v363 = vsel %vm362, 1, 0
        %v364 = vadd.s32 %v354, %v358
        %v365 = vadd.s32 %v357, %v363
        %vm366 = vc.u32 %v364, %v360
        %v367 = vsel %vm366, 1, 0
        %v368 = vadd.s32 %v364, %v360
        %v369 = vadd.s32 %v365, %v367
        %v370 = vadd.s32 %v369, %v359
        %v371 = vadd.s32 %v370, %v361
        %v372 = vand.u32 %v349, 65535
        %v373 = vshrl.u32 %v349, 16
        %v374 = vand.u32 %v344, 65535
        %v375 = vshrl.u32 %v344, 16
        %v376 = vmul.u32 %v372, %v374
        %v377 = vmul.u32 %v372, %v375
        %v378 = vmul.u32 %v373, %v374
        %v379 = vmul.u32 %v373, %v375
        %v380 = vshll.u32 %v377, 16
        %v381 = vshrl.u32 %v377, 16
        %v382 = vshll.u32 %v378, 16
        %v383 = vshrl.u32 %v378, 16
        %vm384 = vc.u32 %v376, %v380
        %v385 = vsel %vm384, 1, 0
        %v386 = vadd.s32 %v376, %v380
        %v387 = vadd.s32 %v379, %v385
        %vm388 = vc.u32 %v386, %v382
        %v389 = vsel %vm388, 1, 0
        %v390 = vadd.s32 %v386, %v382
        %v391 = vadd.s32 %v387, %v389
        %v392 = vadd.s32 %v391, %v381
        %v393 = vadd.s32 %v392, %v383
        %v394 = vmul.u32 %v349, %v340
        %v395 = vadd.s32 %v371, %v390
        %vm396 = vc.u32 %v371, %v390
        %v397 = vadd.s32 %v393, 1
        %v398 = vsel %vm396, %v397, %v393
        %v399 = vadd.s32 %v394, %v398
        %v400 = vadd.s32 %v399, 536870912
        %v401 = vshrl.u32 %v400, 30
        %v402 = vshll.u32 %v401, 30
        %v403 = vsub.s32 %v399, %v402
        %vm404 = vcmp.lt.s32.totalorder %v403, 0
        %v405 = vsub.s32 0, %v403
        %v406 = vsel %vm404, %v405, %v403
        %v407 = vclz %v406
        %v408 = vsub.s32 %v407, 2
        %vm409 = vcmp.gt.s32.totalorder 0, %v408
        %v410 = vsel %vm409, 0, %v408
        %v411 = vsub.s32 32, %v410
        %v412 = vshll.u32 %v403, %v410
        %v413 = vshrl.u32 %v395, %v411
        %v414 = vor.u32 %v412, %v413
        %v415 = vsub.s32 4294967266, %v410
        %v416 = vadd.s32 %v415, 127
        %v417 = vshll.u32 %v416, 23
        %v418 = vor.u32 4788187, %v417
        %v419 = vand.u32 2147483647, %v418
        %v421 = vcvt.s32.f32 %v414
        %v422 = vmul.f32 %v421, %v419
        %v423 = vxor.u32 %v422, 2147483648
        %v424 = vsel %vm303, %v423, %v422
        %v425 = vsub.s32 4, %v401
        %v426 = vsel %vm303, %v425, %v401
        %v427 = vsel %vm302, %v273, %v424
        %v428 = vsel %vm302, 0, %v426
        %v429 = vmul.f32 %v427, %v427
        %v430 = vmul.f32 %v429, -0.001358992
        %v431 = vadd.f32 %v430, 0.041655596
        %v432 = vmul.f32 %v429, %v431
        %v433 = vadd.f32 %v432, -0.4999988
        %v434 = vmul.f32 %v429, %v433
        %v435 = vadd.f32 1.0, %v434
        %v436 = vmul.f32 %v427, %v427
        %v437 = vmul.f32 %v436, -0.00019511016
        %v438 = vadd.f32 %v437, 0.008332121
        %v439 = vmul.f32 %v436, %v438
        %v440 = vadd.f32 %v439, -0.16666654
        %v441 = vmul.f32 %v436, %v440
        %v442 = vadd.f32 %v441, 1.0
        %v443 = vmul.f32 %v442, %v427
        %vm444 = vweird.f32 %v273
        %v445 = vadd.s32 %v428, 3
        %v446 = vand.u32 %v445, 3
        %vm447 = vcmp.lt.s32.totalorder %v446, 2
        %vm448 = vcmp.eq.s32.totalorder %v446, 0
        %v449 = vxor.u32 %v443, 2147483648
        %v450 = vsel %vm448, %v435, %v449
        %vm451 = vcmp.eq.s32.totalorder %v446, 2
        %v452 = vxor.u32 %v435, 2147483648
        %v453 = vsel %vm451, %v452, %v443
        %v454 = vsel %vm447, %v450, %v453
        %v455 = vsel %vm444, nan, %v454
        %v456 = vand.u32 2147483647, %v276
        %vm457 = vcmp.le.f32.partialorder %v456, 0.7853982
        %vm458 = vcmp.lt.s32.totalorder %v276, 0
        %v459 = vand.u32 %v276, 2139095040
        %v460 = vshrl.u32 %v459, 23
        %v461 = vsub.s32 %v460, 127
        %v462 = vand.u32 2147483647, %v276
        %v463 = vand.u32 %v462, 8388607
        %v464 = vor.u32 %v463, 8388608
        %v465 = vsub.s32 0, %v464
        %v466 = vadd.s32 %v461, 1
        %vm467 = vcmp.gt.s32.totalorder %v466, 0
        %v468 = vsel %vm467, %v466, 0
        %v469 = vshrl.u32 %v468, 5
        %v470 = vand.u32 %v468, 31
        %v471 = vsub.s32 32, %v470
        %v472 = vshrl.u32 683565275, %v471
        %v473 = vshll.u32 683565275, %v470
        %v474 = vshrl.u32 2475754826, %v471
        %v475 = vor.u32 %v473, %v474
        %v476 = vshll.u32 2475754826, %v470
        %v477 = vshrl.u32 2131351028, %v471
        %v478 = vor.u32 %v476, %v477
        %v479 = vshll.u32 2131351028, %v470
        %v480 = vshrl.u32 2102212464, %v471
        %v481 = vor.u32 %v479, %v480
        %v482 = vshll.u32 2102212464, %v470
        %v483 = vshrl.u32 920167782, %v471
        %v484 = vor.u32 %v482, %v483
        %v485 = vshll.u32 920167782, %v470
        %v486 = vshrl.u32 1326507024, %v471
        %v487 = vor.u32 %v485, %v486
        %vm488 = vcmp.lt.s32.totalorder %v469, 1
        %vm489 = vcmp.lt.s32.totalorder %v469, 2
        %vm490 = vcmp.lt.s32.totalorder %v469, 3
        %vm491 = vcmp.lt.s32.totalorder %v469, 4
        %v492 = vsel %vm488, %v472, %v475
        %v493 = vsel %vm491, %v481, 2102212464
        %v494 = vsel %vm490, %v478, %v493
        %v495 = vsel %vm489, %v492, %v494
        %v496 = vsel %vm488, %v475, %v478
        %v497 = vsel %vm491, %v484, 920167782
        %v498 = vsel %vm490, %v481, %v497
        %v499 = vsel %vm489, %v496, %v498
        %v500 = vsel %vm488, %v478, %v481
        %v501 = vsel %vm491, %v487, 1326507024
        %v502 = vsel %vm490, %v484, %v501
        %v503 = vsel %vm489, %v500, %v502
        %v504 = vshll.u32 %v464, 8
        %v505 = vand.u32 %v504, 65535
        %v506 = vshrl.u32 %v504, 16
        %v507 = vand.u32 %v503, 65535
        %v508 = vshrl.u32 %v503, 16
        %v509 = vmul.u32 %v505, %v507
        %v510 = vmul.u32 %v505, %v508
        %v511 = vmul.u32 %v506, %v507
        %v512 = vmul.u32 %v506, %v508
        %v513 = vshll.u32 %v510, 16
        %v514 = vshrl.u32 %v510, 16
        %v515 = vshll.u32 %v511, 16
        %v516 = vshrl.u32 %v511, 16
        %vm517 = vc.u32 %v509, %v513
        %v518 = vsel %vm517, 1, 0
        %v519 = vadd.s32 %v509, %v513
        %v520 = vadd.s32 %v512, %v518
        %vm521 = vc.u32 %v519, %v515
        %v522 = vsel %vm521, 1, 0
        %v523 = vadd.s32 %v519, %v515
        %v524 = vadd.s32 %v520, %v522
        %v525 = vadd.s32 %v524, %v514
        %v526 = vadd.s32 %v525, %v516
        %v527 = vand.u32 %v504, 65535
        %v528 = vshrl.u32 %v504, 16
        %v529 = vand.u32 %v499, 65535
        %v530 = vshrl.u32 %v499, 16
        %v531 = vmul.u32 %v527, %v529
        %v532 = vmul.u32 %v527, %v530
        %v533 = vmul.u32 %v528, %v529
        %v534 = vmul.u32 %v528, %v530
        %v535 = vshll.u32 %v532, 16
        %v536 = vshrl.u32 %v532, 16
        %v537 = vshll.u32 %v533, 16
        %v538 = vshrl.u32 %v533, 16
        %vm539 = vc.u32 %v531, %v535
        %v540 = vsel %vm539, 1, 0
        %v541 = vadd.s32 %v531, %v535
        %v542 = vadd.s32 %v534, %v540
        %vm543 = vc.u32 %v541, %v537
        %v544 = vsel %vm543, 1, 0
        %v545 = vadd.s32 %v541, %v537
        %v546 = vadd.s32 %v542, %v544
        %v547 = vadd.s32 %v546, %v536
        %v548 = vadd.s32 %v547, %v538
        %v549 = vmul.u32 %v504, %v495
        %v550 = vadd.s32 %v526, %v545
        %vm551 = vc.u32 %v526, %v545
        %v552 = vadd.s32 %v548, 1
        %v553 = vsel %vm551, %v552, %v548
        %v554 = vadd.s32 %v549, %v553
        %v555 = vadd.s32 %v554, 536870912
        %v556 = vshrl.u32 %v555, 30
        %v557 = vshll.u32 %v556, 30
        %v558 = vsub.s32 %v554, %v557
        %vm559 = vcmp.lt.s32.totalorder %v558, 0
        %v560 = vsub.s32 0, %v558
        %v561 = vsel %vm559, %v560, %v558
        %v562 = vclz %v561
        %v563 = vsub.s32 %v562, 2
        %vm564 = vcmp.gt.s32.totalorder 0, %v563
        %v565 = vsel %vm564, 0, %v563
        %v566 = vsub.s32 32, %v565
        %v567 = vshll.u32 %v558, %v565
        %v568 = vshrl.u32 %v550, %v566
        %v569 = vor.u32 %v567, %v568
        %v570 = vsub.s32 4294967266, %v565
        %v571 = vadd.s32 %v570, 127
        %v572 = vshll.u32 %v571, 23
        %v573 = vor.u32 4788187, %v572
        %v574 = vand.u32 2147483647, %v573
        %v576 = vcvt.s32.f32 %v569
        %v577 = vmul.f32 %v576, %v574
        %v578 = vxor.u32 %v577, 2147483648
        %v579 = vsel %vm458, %v578, %v577
        %v580 = vsub.s32 4, %v556
        %v581 = vsel %vm458, %v580, %v556
        %v582 = vsel %vm457, %v276, %v579
        %v583 = vsel %vm457, 0, %v581
        %v584 = vmul.f32 %v582, %v582
        %v585 = vmul.f32 %v584, -0.001358992
        %v586 = vadd.f32 %v585, 0.041655596
        %v587 = vmul.f32 %v584, %v586
        %v588 = vadd.f32 %v587, -0.4999988
        %v589 = vmul.f32 %v584, %v588
        %v590 = vadd.f32 1.0, %v589
        %v591 = vmul.f32 %v582, %v582
        %v592 = vmul.f32 %v591, -0.00019511016
        %v593 = vadd.f32 %v592, 0.008332121
        %v594 = vmul.f32 %v591, %v593
        %v595 = vadd.f32 %v594, -0.16666654
        %v596 = vmul.f32 %v591, %v595
        %v597 = vadd.f32 %v596, 1.0
        %v598 = vmul.f32 %v597, %v582
        %vm599 = vweird.f32 %v276
        %v600 = vadd.s32 %v583, 3
        %v601 = vand.u32 %v600, 3
        %vm602 = vcmp.lt.s32.totalorder %v601, 2
        %vm603 = vcmp.eq.s32.totalorder %v601, 0
        %v604 = vxor.u32 %v598, 2147483648
        %v605 = vsel %vm603, %v590, %v604
        %vm606 = vcmp.eq.s32.totalorder %v601, 2
        %v607 = vxor.u32 %v590, 2147483648
        %v608 = vsel %vm606, %v607, %v598
        %v609 = vsel %vm602, %v605, %v608
        %v610 = vsel %vm599, nan, %v609
        %611 = vst [vmem:[%s221] sm:$0xff] %v455
        %612 = vst [vmem:[%s221 + $0x8] sm:$0xff] %v610
        %s613 = scalar_lea.vmem %s221, 16 [#allocation8]
        %614 = vst [vmem:[%s613] sm:$0xff] %v296
        %615 = vst [vmem:[%s613 + $0x8] sm:$0xff] %v299
        %s616 = sand.u32 %s97, 1
        %s617 = scalar_lea.sflag [#allocation4], %s616
        %s618 = sand.u32 %s97, 1
        %s619 = smul.addr %s618, 32
        %s620 = scalar_lea.vmem [#allocation8], %s619
        // Predicated region
        $region45: #{tpu_custom_call.1} parent=31 // pred_check
          %p621 = pneg %p107
        $region46: #{tpu_custom_call.1} parent=31 // pred_check_branch
          %623 = sbr.rel (%p621) target = $region48
        $region47: #{tpu_custom_call.1} parent=31 // pred_region
          #allocation10 [shape = 'u32[6]{0}', space=smem, size = 0x18, scoped, tag = 'DMA stride descriptor']
          %s624 = smul.u32 2, %s21
          %626 = vsyncadd %s617, 0
          %s627 = smul.addr %s624, 8
          %s628 = scalar_lea.hbm %s3, %s627
          %s630 = sshll.u32 1, 14
          %s631 = sxor.u32 4294967295, %s630
          %s634 = sshll.u32 7, 18
          %s635 = sxor.u32 4294967295, %s634
          %s636 = sand.u32 0, %s635
          %s638 = sor.u32 %s636, 0
          %s639 = sshll.u32 %s620, 4
          %s640 = int_to_ptr.vmem [resolvable:$true] %s639
          %s641 = sshll.u32 %s628, 4
          %s642 = int_to_ptr.hbm [resolvable:$true] %s641
          %648 = sst [smem:[#allocation10]] 256
          %s649 = scalar_lea.smem [#allocation10], 1
          %650 = sst [smem:[%s649]] 1024
          %s651 = scalar_lea.smem [#allocation10], 2
          %652 = sst [smem:[%s651]] 2
          %s653 = scalar_lea.smem [#allocation10], 3
          %654 = sst [smem:[%s653]] 128
          %s655 = scalar_lea.smem [#allocation10], 4
          %656 = sst [smem:[%s655]] 128
          %s657 = scalar_lea.smem [#allocation10], 5
          %658 = sst [smem:[%s657]] 8
          %660 = dma.general %s640, 512, %s642, %s617, [#allocation9], [#allocation10], %s638, 0
        $region48: #{tpu_custom_call.1} parent=31 // pred_fallthru
          _
      $region32: #{tpu_custom_call.1} parent=5 // pred_fallthru
        _
      %p661 = scmp.le.s32.totalorder 2, %s16
      // Predicated region
      $region49: #{tpu_custom_call.1} parent=5 // pred_check
        %p662 = pneg %p661
      $region50: #{tpu_custom_call.1} parent=5 // pred_check_branch
        %664 = sbr.rel (%p662) target = $region52
      $region51: #{tpu_custom_call.1} parent=5 // pred_region
        %s665 = ssub.s32 %s16, 2
        // Predicated region
        $region53: #{tpu_custom_call.1} parent=51 // pred_check
          %p666 = pneg %p113
        $region54: #{tpu_custom_call.1} parent=51 // pred_check_branch
          %668 = sbr.rel (%p666) target = $region56
        $region55: #{tpu_custom_call.1} parent=51 // pred_region
          %s669 = sand.u32 %s98, 1
          %s670 = scalar_lea.sflag [#allocation4], %s669
          %s671 = sand.u32 %s98, 1
          %s672 = smul.addr %s671, 32
          %s673 = scalar_lea.vmem [#allocation8], %s672
          %675 = dma.done %s670, 512
        $region56: #{tpu_custom_call.1} parent=51 // pred_fallthru
          _
      $region52: #{tpu_custom_call.1} parent=5 // pred_fallthru
        _
    $region6: #{tpu_custom_call.1} parent=1 // loop_footer
      %s20 = sadd.s32 1, %s16
    $region7: #{tpu_custom_call.1} parent=1 // loop_footer_branch
      %15 = sbr.rel target = $region3
    $region8: #{tpu_custom_call.1} parent=1 // loop_exit
      _
    %676 = vsyncpa [#allocation3], 1
    %s677 = scalar_lea.sflag [#allocation3], 1
    %678 = vsyncpa %s677, 1
    %679 = vsyncpa [#allocation6], 1
    %680 = vsyncpa [#allocation4], 1
    %s681 = scalar_lea.sflag [#allocation4], 1
    %682 = vsyncpa %s681, 1

</llo_original>
